<compile_context>
chip_gen: v7x
topology: tpu7x:2x2x1
jax: 0.10.0
libtpu: 0.0.40
codegen_flags: <defaults>
</compile_context>

<pallas_src>
import jax
import jax.numpy as jnp
from jax import lax
from jax.experimental import pallas as pl
from jax.experimental.pallas import tpu as pltpu

# ---- config (consistent with the module's __init__) -------------------------
CHANNEL = 32            # use_map=False, use_vis=False -> 32
ANCHOR_NUM = 2          # len(config.anchor_size)
BOX_CODE_SIZE = 6
OUT_SEQ_LEN = 1         # only_det=True
C_OUT = ANCHOR_NUM * BOX_CODE_SIZE * OUT_SEQ_LEN   # 12
BN_EPS = 1e-5

LANE = 128              # TPU lane width: channel dims are zero-padded to this
MAX_TM = 2048           # row-tile upper bound (few MiB of VMEM with dbl-buffer)


def _round_up(x, m):
    return ((x + m - 1) // m) * m


def head_kernel(x_ref, w1_ref, shift_ref, w2_ref, b2_ref, o_ref):
    """One row-tile of the fused head.

    x_ref:     (TM, 9*Cin)   bf16  im2col'd input rows
    w1_ref:    (9*Cin, 128)  bf16  3x3 conv weights with BN scale folded in,
                                   Cmid zero-padded to 128 lanes
    shift_ref: (1, 128)      f32   folded shift = beta + scale*(b1 - mean)
    w2_ref:    (128, 128)    bf16  1x1 conv weights, zero-padded rows/cols
    b2_ref:    (1, 128)      f32   1x1 conv bias, zero-padded
    o_ref:     (TM, 128)     f32   lane-dense output slab
    """
    # 3x3 conv (+ folded BN scale) == one K = 9*Cin matmul, f32 accumulation.
    acc = jnp.dot(x_ref[...], w1_ref[...], preferred_element_type=jnp.float32)
    # remaining BN/bias shift + ReLU, in f32.
    hidden = jnp.maximum(acc + shift_ref[...], 0.0)
    # 1x1 conv == channel matmul; bf16 operands, f32 accumulation + bias.
    out = jnp.dot(hidden.astype(jnp.bfloat16), w2_ref[...],
                  preferred_element_type=jnp.float32)
    o_ref[...] = out + b2_ref[...]


def single_regression_head(x_nchw, params):
    """Pallas forward pass. Input/output in PyTorch NCHW convention."""
    n, cin, h, w = x_nchw.shape
    cmid = params["w1"].shape[0]
    cout = params["w2"].shape[0]

    # ---- glue: layout + im2col + parameter folding (plain JAX) -------------
    # TODO(synk): in a full model, keep activations NHWC end-to-end and fold
    # the halo taps into the kernel's DMA to avoid these extra HBM passes.
    x_nhwc = jnp.transpose(x_nchw, (0, 2, 3, 1))
    x_pad = jnp.pad(x_nhwc, ((0, 0), (1, 1), (1, 1), (0, 0)))
    taps = [x_pad[:, dh:dh + h, dw:dw + w, :]
            for dh in range(3) for dw in range(3)]
    k_dim = 9 * cin
    x_cols = jnp.concatenate(taps, axis=-1).reshape(n * h * w, k_dim)

    # Fold batch into the matmul M dim; tile rows; keep >=2 parallel steps.
    m = n * h * w
    tm = min(MAX_TM, _round_up(m, 8))
    if pl.cdiv(m, tm) < 2 and m > 8:            # v7x: 2 TensorCores per chip
        tm = _round_up(pl.cdiv(m, 2), 8)
    grid_m = pl.cdiv(m, tm)
    m_pad = grid_m * tm
    x_cols = jnp.pad(x_cols, ((0, m_pad - m), (0, 0))).astype(jnp.bfloat16)

    # eval-mode BN: scale folds into the 3x3 weights, shift stays in-kernel.
    scale = params["gamma"] / jnp.sqrt(params["var"] + BN_EPS)          # (Cmid,)
    shift = params["beta"] + scale * (params["b1"] - params["mean"])    # (Cmid,)
    shift = jnp.pad(shift, (0, LANE - cmid)).reshape(1, LANE).astype(jnp.float32)

    # 3x3 weights: OIHW -> (kh, kw, Cin, Cmid) -> (9*Cin, Cmid); scale-fold in
    # f32, then pad Cmid->128 and cast to bf16.
    w1_mat = jnp.transpose(params["w1"], (2, 3, 1, 0)).reshape(k_dim, cmid)
    w1_mat = w1_mat * scale[None, :]
    w1_mat = jnp.pad(w1_mat, ((0, 0), (0, LANE - cmid))).astype(jnp.bfloat16)

    # 1x1 weights: (Cout, Cmid, 1, 1) -> (Cmid, Cout); zero-pad both to 128.
    w2_mat = jnp.transpose(params["w2"][:, :, 0, 0], (1, 0))
    w2_mat = jnp.pad(w2_mat, ((0, LANE - cmid),
                              (0, LANE - cout))).astype(jnp.bfloat16)
    b2 = jnp.pad(params["b2"], (0, LANE - cout)).reshape(1, LANE)
    b2 = b2.astype(jnp.float32)

    flops = 2 * m_pad * (k_dim * LANE + LANE * LANE)
    bytes_accessed = (m_pad * k_dim * 2 + m_pad * LANE * 4
                      + (k_dim * LANE + LANE * LANE) * 2 + 2 * LANE * 4)

    out_slab = pl.pallas_call(
        head_kernel,
        out_shape=jax.ShapeDtypeStruct((m_pad, LANE), jnp.float32),
        grid_spec=pltpu.PrefetchScalarGridSpec(
            num_scalar_prefetch=0,
            grid=(grid_m,),
            in_specs=[
                pl.BlockSpec((tm, k_dim), lambda i: (i, 0)),
                pl.BlockSpec((k_dim, LANE), lambda i: (0, 0)),
                pl.BlockSpec((1, LANE), lambda i: (0, 0)),
                pl.BlockSpec((LANE, LANE), lambda i: (0, 0)),
                pl.BlockSpec((1, LANE), lambda i: (0, 0)),
            ],
            out_specs=pl.BlockSpec((tm, LANE), lambda i: (i, 0)),
        ),
        compiler_params=pltpu.CompilerParams(
            dimension_semantics=("parallel",),
            vmem_limit_bytes=48 * 1024 * 1024),
        cost_estimate=pl.CostEstimate(
            flops=flops, transcendentals=0, bytes_accessed=bytes_accessed),
    )(x_cols, w1_mat, shift, w2_mat, b2)

    out_nhwc = out_slab[:m, :cout].reshape(n, h, w, cout)
    return jnp.transpose(out_nhwc, (0, 3, 1, 2))             # back to NCHW


def reference_forward(x_nchw, params):
    """Plain-JAX reference (matches PyTorch eval-mode forward), f32 precision."""
    y = lax.conv_general_dilated(
        x_nchw, params["w1"], (1, 1), "SAME",
        dimension_numbers=("NCHW", "OIHW", "NCHW"),
        precision=lax.Precision.HIGHEST)
    y = y + params["b1"][None, :, None, None]
    y = (y - params["mean"][None, :, None, None]) / jnp.sqrt(
        params["var"] + BN_EPS)[None, :, None, None]
    y = y * params["gamma"][None, :, None, None] + params["beta"][None, :, None, None]
    y = jnp.maximum(y, 0.0)
    y = lax.conv_general_dilated(
        y, params["w2"], (1, 1), "VALID",
        dimension_numbers=("NCHW", "OIHW", "NCHW"),
        precision=lax.Precision.HIGHEST)
    return y + params["b2"][None, :, None, None]


def make_params(key):
    ks = jax.random.split(key, 8)
    c, co = CHANNEL, C_OUT
    return {
        "w1":    0.05 * jax.random.normal(ks[0], (c, c, 3, 3), jnp.float32),
        "b1":    0.05 * jax.random.normal(ks[1], (c,), jnp.float32),
        "gamma": 1.0 + 0.1 * jax.random.normal(ks[2], (c,), jnp.float32),
        "beta":  0.1 * jax.random.normal(ks[3], (c,), jnp.float32),
        "mean":  0.1 * jax.random.normal(ks[4], (c,), jnp.float32),
        "var":   jax.random.uniform(ks[5], (c,), jnp.float32, 0.5, 1.5),
        "w2":    0.05 * jax.random.normal(ks[6], (co, c, 1, 1), jnp.float32),
        "b2":    0.05 * jax.random.normal(ks[7], (co,), jnp.float32),
    }


if __name__ == "__main__":
    key = jax.random.PRNGKey(0)
    k_x, k_p = jax.random.split(key)

    N, H, W = 2, 16, 16
    x = jax.random.normal(k_x, (N, CHANNEL, H, W), jnp.float32)   # NCHW like PyTorch
    params = make_params(k_p)

    out = jax.block_until_ready(single_regression_head(x, params))
    ref = jax.block_until_ready(reference_forward(x, params))

    assert out.shape == (N, C_OUT, H, W), out.shape
    # bf16 MXU operands with f32 accumulation -> bf16-level tolerance vs f32 ref.
    max_err = float(jnp.max(jnp.abs(out - ref)))
    assert jnp.allclose(out, ref, atol=3e-2, rtol=3e-2), max_err

    print("KERNEL_OK")
</pallas_src>

<mosaic_0001>
module attributes {stable_mosaic.version = 11 : i64} {
  func.func @head_kernel(%arg0: i32, %arg1: memref<256x288xbf16, #tpu.memory_space<vmem>>, %arg2: memref<288x128xbf16, #tpu.memory_space<vmem>>, %arg3: memref<1x128xf32, #tpu.memory_space<vmem>>, %arg4: memref<128x128xbf16, #tpu.memory_space<vmem>>, %arg5: memref<1x128xf32, #tpu.memory_space<vmem>>, %arg6: memref<256x128xf32, #tpu.memory_space<vmem>>) attributes {dimension_semantics = [#tpu.dimension_semantics<parallel>], iteration_bounds = array<i64: 2>, scalar_prefetch = 0 : i64, scratch_operands = 0 : i64, tpu.core_type = #tpu.core_type<tc>, window_params = [{transform_indices = @transform_0, window_bounds = array<i64: 256, 288>}, {pipeline_mode = #tpu.pipeline_mode<synchronous>, transform_indices = @transform_1, window_bounds = array<i64: 288, 128>}, {pipeline_mode = #tpu.pipeline_mode<synchronous>, transform_indices = @transform_2, window_bounds = array<i64: 1, 128>}, {pipeline_mode = #tpu.pipeline_mode<synchronous>, transform_indices = @transform_3, window_bounds = array<i64: 128, 128>}, {pipeline_mode = #tpu.pipeline_mode<synchronous>, transform_indices = @transform_4, window_bounds = array<i64: 1, 128>}, {transform_indices = @transform_5, window_bounds = array<i64: 256, 128>}]} {
    %c0 = arith.constant 0 : index
    %c0_0 = arith.constant 0 : index
    %0 = vector.load %arg1[%c0, %c0_0] : memref<256x288xbf16, #tpu.memory_space<vmem>>, vector<256x288xbf16>
    %c0_1 = arith.constant 0 : index
    %c0_2 = arith.constant 0 : index
    %1 = vector.load %arg2[%c0_1, %c0_2] : memref<288x128xbf16, #tpu.memory_space<vmem>>, vector<288x128xbf16>
    %cst = arith.constant dense<0.000000e+00> : vector<256x128xf32>
    %2 = tpu.matmul %0, %1, %cst {dimension_numbers = #tpu.dot_dimension_numbers<[1], [0], [0], [1], [0, 0, 1, 1], [], []>} : vector<256x288xbf16>, vector<288x128xbf16>, vector<256x128xf32> -> vector<256x128xf32>
    %c0_3 = arith.constant 0 : index
    %c0_4 = arith.constant 0 : index
    %3 = vector.load %arg3[%c0_3, %c0_4] : memref<1x128xf32, #tpu.memory_space<vmem>>, vector<1x128xf32>
    %4 = vector.broadcast %3 : vector<1x128xf32> to vector<256x128xf32>
    %5 = arith.addf %2, %4 : vector<256x128xf32>
    %cst_5 = arith.constant 0.000000e+00 : f32
    %6 = vector.broadcast %cst_5 : f32 to vector<256x128xf32>
    %7 = arith.maximumf %5, %6 : vector<256x128xf32>
    %8 = arith.truncf %7 : vector<256x128xf32> to vector<256x128xbf16>
    %c0_6 = arith.constant 0 : index
    %c0_7 = arith.constant 0 : index
    %9 = vector.load %arg4[%c0_6, %c0_7] : memref<128x128xbf16, #tpu.memory_space<vmem>>, vector<128x128xbf16>
    %cst_8 = arith.constant dense<0.000000e+00> : vector<256x128xf32>
    %10 = tpu.matmul %8, %9, %cst_8 {dimension_numbers = #tpu.dot_dimension_numbers<[1], [0], [0], [1], [0, 0, 1, 1], [], []>} : vector<256x128xbf16>, vector<128x128xbf16>, vector<256x128xf32> -> vector<256x128xf32>
    %c0_9 = arith.constant 0 : index
    %c0_10 = arith.constant 0 : index
    %11 = vector.load %arg5[%c0_9, %c0_10] : memref<1x128xf32, #tpu.memory_space<vmem>>, vector<1x128xf32>
    %12 = vector.broadcast %11 : vector<1x128xf32> to vector<256x128xf32>
    %13 = arith.addf %10, %12 : vector<256x128xf32>
    %c0_11 = arith.constant 0 : index
    %c0_12 = arith.constant 0 : index
    %14 = vector.load %arg6[%c0_11, %c0_12] : memref<256x128xf32, #tpu.memory_space<vmem>>, vector<256x128xf32>
    tpu.vector_store %arg6[%c0_11, %c0_12], %13 {strides = array<i32>} : memref<256x128xf32, #tpu.memory_space<vmem>>, vector<256x128xf32>,
    return
  }
  func.func @transform_0(%arg0: i32) -> (i32, i32) {
    %c0_i32 = arith.constant 0 : i32
    %c0_i32_0 = arith.constant 0 : i32
    return %arg0, %c0_i32 : i32, i32
  }
  func.func @transform_1(%arg0: i32) -> (i32, i32) {
    %c0_i32 = arith.constant 0 : i32
    %c0_i32_0 = arith.constant 0 : i32
    %c0_i32_1 = arith.constant 0 : i32
    return %c0_i32, %c0_i32_0 : i32, i32
  }
  func.func @transform_2(%arg0: i32) -> (i32, i32) {
    %c0_i32 = arith.constant 0 : i32
    %c0_i32_0 = arith.constant 0 : i32
    %c0_i32_1 = arith.constant 0 : i32
    return %c0_i32, %c0_i32_0 : i32, i32
  }
  func.func @transform_3(%arg0: i32) -> (i32, i32) {
    %c0_i32 = arith.constant 0 : i32
    %c0_i32_0 = arith.constant 0 : i32
    %c0_i32_1 = arith.constant 0 : i32
    return %c0_i32, %c0_i32_0 : i32, i32
  }
  func.func @transform_4(%arg0: i32) -> (i32, i32) {
    %c0_i32 = arith.constant 0 : i32
    %c0_i32_0 = arith.constant 0 : i32
    %c0_i32_1 = arith.constant 0 : i32
    return %c0_i32, %c0_i32_0 : i32, i32
  }
  func.func @transform_5(%arg0: i32) -> (i32, i32) {
    %c0_i32 = arith.constant 0 : i32
    %c0_i32_0 = arith.constant 0 : i32
    return %arg0, %c0_i32 : i32, i32
  }
}

</mosaic_0001>

<llo_original>
// kernel: tpu_custom_call.1
$region0: #{tpu_custom_call.1}
  #allocation0 [shape = 'u32[]', space=smem, size = 0x4, offset = 0x4, fixed_abs, tag = 'smem constant byte address 0x4 - core index']
  #allocation1 [shape = 'u32[144,128]{1,0:T(1,128)}', space=vmem, size = 0x12000, scoped, tag = 'internal scratch']
  %s0 = inlined_call_operand.vmem [shape: bf16[512,288], index: 0, kind: input, shape index: {}]
  %s1 = inlined_call_operand.vmem [shape: bf16[288,128], index: 1, kind: input, shape index: {}]
  %s2 = inlined_call_operand.vmem [shape: f32[1,128], index: 2, kind: input, shape index: {}]
  %s3 = inlined_call_operand.vmem [shape: bf16[128,128], index: 3, kind: input, shape index: {}]
  %s4 = inlined_call_operand.vmem [shape: f32[1,128], index: 4, kind: input, shape index: {}]
  %s5 = inlined_call_operand.hbm [shape: f32[512,128], index: 5, kind: output, shape index: {}]
  %s6 = sld [smem:[#allocation0]]
  $region53: #{tpu_custom_call.1} parent=0
    _
  %s8 = ssub.s32 1, %s6
  %s9 = scalar_select 0, %s8, %s6
  $region1: #{tpu_custom_call.1} parent=0
    #allocation2 [shape = 'u8[262144]{0}', space=vmem, size = 0x40000, scoped, tag = 'output window, operand 0']
    #allocation3 [shape = 's32[2]{0}', space=sflag, size = 0x8, scoped, tag = 'scoped memory for tpu_custom_call.1']
    %10 = vsyncpa [#allocation3], 0
    %s11 = scalar_lea.sflag [#allocation3], 1
    %12 = vsyncpa %s11, 0
    loop: start=0, step=1, limit=4
    $region2: #{tpu_custom_call.1} parent=1 // loop_pre_header
      _
    $region3: #{tpu_custom_call.1} parent=1 // loop_header
      %s14 = sphi 0, %s18
      %p15 = scmp.ge.s32.totalorder %s14, 4
      %s24 = sphi 0, %s26
      %s27 = sphi 0, %s24
      %s28 = sphi 0, %s27
      %s44 = sphi 0, %s28
      %s48 = sphi 0, %s48
      %s50 = sphi 0, %s48
      %s51 = sphi 0, %s50
      %s65 = sphi 0, %s51
      %s69 = sphi 0, %s69
      %s71 = sphi 0, %s69
      %s72 = sphi 0, %s71
      %s86 = sphi 0, %s72
      %s90 = sphi 0, %s90
      %s92 = sphi 0, %s90
      %s93 = sphi 0, %s92
      %s107 = sphi 0, %s93
      %s111 = sphi 0, %s111
      %s113 = sphi 0, %s111
      %s114 = sphi 0, %s113
      %s128 = sphi 0, %s114
      %s134 = sphi 0, %s136
      %s137 = sphi 0, %s134
      %s138 = sphi 0, %s137
      %s154 = sphi 0, %s138
    $region4: #{tpu_custom_call.1} parent=1 // loop_header_branch
      %17 = sbr.rel (%p15) target = $region8
    $region5: #{tpu_custom_call.1} parent=1 // loop_body
      %s19 = ssub.s32 %s14, 1
      %s20 = ssub.s32 %s14, 2
      %s21 = sadd.s32 %s14, 1
      %s22 = ssub.s32 %s14, %s21
      %p23 = scmp.eq.s32.totalorder %s22, 0
      %s25 = sadd.s32 %s24, 1
      %s26 = scalar_select %p23, %s24, %s25
      %p29 = pneg %p23
      %p30 = scmp.eq.s32.totalorder %s14, 1
      %p31 = por %p29, %p30
      %p32 = scmp.ne.s32.totalorder %s24, %s27
      %p33 = scmp.eq.s32.totalorder %s14, 0
      %p34 = por %p32, %p33
      %p35 = scmp.ne.s32.totalorder %s24, %s27
      %p36 = scmp.eq.s32.totalorder %s19, 1
      %p37 = por %p35, %p36
      %p38 = scmp.ne.s32.totalorder %s27, %s28
      %p39 = scmp.eq.s32.totalorder %s19, 0
      %p40 = por %p38, %p39
      %p41 = scmp.ne.s32.totalorder %s27, %s28
      %p42 = scmp.eq.s32.totalorder %s20, 1
      %p43 = por %p41, %p42
      %p45 = scmp.ne.s32.totalorder %s28, %s44
      %p46 = scmp.eq.s32.totalorder %s20, 0
      %p47 = por %p45, %p46
      %s49 = sadd.s32 %s48, 1
      %p52 = scmp.eq.s32.totalorder %s14, 1
      %p53 = scmp.ne.s32.totalorder %s48, %s50
      %p54 = scmp.eq.s32.totalorder %s14, 0
      %p55 = por %p53, %p54
      %p56 = scmp.ne.s32.totalorder %s48, %s50
      %p57 = scmp.eq.s32.totalorder %s19, 1
      %p58 = por %p56, %p57
      %p59 = scmp.ne.s32.totalorder %s50, %s51
      %p60 = scmp.eq.s32.totalorder %s19, 0
      %p61 = por %p59, %p60
      %p62 = scmp.ne.s32.totalorder %s50, %s51
      %p63 = scmp.eq.s32.totalorder %s20, 1
      %p64 = por %p62, %p63
      %p66 = scmp.ne.s32.totalorder %s51, %s65
      %p67 = scmp.eq.s32.totalorder %s20, 0
      %p68 = por %p66, %p67
      %s70 = sadd.s32 %s69, 1
      %p73 = scmp.eq.s32.totalorder %s14, 1
      %p74 = scmp.ne.s32.totalorder %s69, %s71
      %p75 = scmp.eq.s32.totalorder %s14, 0
      %p76 = por %p74, %p75
      %p77 = scmp.ne.s32.totalorder %s69, %s71
      %p78 = scmp.eq.s32.totalorder %s19, 1
      %p79 = por %p77, %p78
      %p80 = scmp.ne.s32.totalorder %s71, %s72
      %p81 = scmp.eq.s32.totalorder %s19, 0
      %p82 = por %p80, %p81
      %p83 = scmp.ne.s32.totalorder %s71, %s72
      %p84 = scmp.eq.s32.totalorder %s20, 1
      %p85 = por %p83, %p84
      %p87 = scmp.ne.s32.totalorder %s72, %s86
      %p88 = scmp.eq.s32.totalorder %s20, 0
      %p89 = por %p87, %p88
      %s91 = sadd.s32 %s90, 1
      %p94 = scmp.eq.s32.totalorder %s14, 1
      %p95 = scmp.ne.s32.totalorder %s90, %s92
      %p96 = scmp.eq.s32.totalorder %s14, 0
      %p97 = por %p95, %p96
      %p98 = scmp.ne.s32.totalorder %s90, %s92
      %p99 = scmp.eq.s32.totalorder %s19, 1
      %p100 = por %p98, %p99
      %p101 = scmp.ne.s32.totalorder %s92, %s93
      %p102 = scmp.eq.s32.totalorder %s19, 0
      %p103 = por %p101, %p102
      %p104 = scmp.ne.s32.totalorder %s92, %s93
      %p105 = scmp.eq.s32.totalorder %s20, 1
      %p106 = por %p104, %p105
      %p108 = scmp.ne.s32.totalorder %s93, %s107
      %p109 = scmp.eq.s32.totalorder %s20, 0
      %p110 = por %p108, %p109
      %s112 = sadd.s32 %s111, 1
      %p115 = scmp.eq.s32.totalorder %s14, 1
      %p116 = scmp.ne.s32.totalorder %s111, %s113
      %p117 = scmp.eq.s32.totalorder %s14, 0
      %p118 = por %p116, %p117
      %p119 = scmp.ne.s32.totalorder %s111, %s113
      %p120 = scmp.eq.s32.totalorder %s19, 1
      %p121 = por %p119, %p120
      %p122 = scmp.ne.s32.totalorder %s113, %s114
      %p123 = scmp.eq.s32.totalorder %s19, 0
      %p124 = por %p122, %p123
      %p125 = scmp.ne.s32.totalorder %s113, %s114
      %p126 = scmp.eq.s32.totalorder %s20, 1
      %p127 = por %p125, %p126
      %p129 = scmp.ne.s32.totalorder %s114, %s128
      %p130 = scmp.eq.s32.totalorder %s20, 0
      %p131 = por %p129, %p130
      %s132 = ssub.s32 %s14, %s21
      %p133 = scmp.eq.s32.totalorder %s132, 0
      %s135 = sadd.s32 %s134, 1
      %s136 = scalar_select %p133, %s134, %s135
      %p139 = pneg %p133
      %p140 = scmp.eq.s32.totalorder %s14, 1
      %p141 = por %p139, %p140
      %p142 = scmp.ne.s32.totalorder %s134, %s137
      %p143 = scmp.eq.s32.totalorder %s14, 0
      %p144 = por %p142, %p143
      %p145 = scmp.ne.s32.totalorder %s134, %s137
      %p146 = scmp.eq.s32.totalorder %s19, 1
      %p147 = por %p145, %p146
      %p148 = scmp.ne.s32.totalorder %s137, %s138
      %p149 = scmp.eq.s32.totalorder %s19, 0
      %p150 = por %p148, %p149
      %p151 = scmp.ne.s32.totalorder %s137, %s138
      %p152 = scmp.eq.s32.totalorder %s20, 1
      %p153 = por %p151, %p152
      %p155 = scmp.ne.s32.totalorder %s138, %s154
      %p156 = scmp.eq.s32.totalorder %s20, 0
      %p157 = por %p155, %p156
      %p158 = scmp.le.s32.totalorder 1, %s14
      %p159 = scmp.lt.s32.totalorder %s14, 3
      %p160 = pnand %p158, %p159
      %p161 = pneg %p160
      // Predicated region
      $region9: #{tpu_custom_call.1} parent=5 // pred_check
        _
      $region10: #{tpu_custom_call.1} parent=5 // pred_check_branch
        %163 = sbr.rel (%p160) target = $region12
      $region11: #{tpu_custom_call.1} parent=5 // pred_region
        %s164 = ssub.s32 %s14, 1
        // Predicated region
        $region13: #{tpu_custom_call.1} parent=11 // pred_check
          %p165 = pneg %p61
        $region14: #{tpu_custom_call.1} parent=11 // pred_check_branch
          %167 = sbr.rel (%p165) target = $region16
        $region15: #{tpu_custom_call.1} parent=11 // pred_region
          _
        $region16: #{tpu_custom_call.1} parent=11 // pred_fallthru
          _
        // Predicated region
        $region17: #{tpu_custom_call.1} parent=11 // pred_check
          %p168 = pneg %p82
        $region18: #{tpu_custom_call.1} parent=11 // pred_check_branch
          %170 = sbr.rel (%p168) target = $region20
        $region19: #{tpu_custom_call.1} parent=11 // pred_region
          _
        $region20: #{tpu_custom_call.1} parent=11 // pred_fallthru
          _
        // Predicated region
        $region21: #{tpu_custom_call.1} parent=11 // pred_check
          %p171 = pneg %p103
        $region22: #{tpu_custom_call.1} parent=11 // pred_check_branch
          %173 = sbr.rel (%p171) target = $region24
        $region23: #{tpu_custom_call.1} parent=11 // pred_region
          _
        $region24: #{tpu_custom_call.1} parent=11 // pred_fallthru
          _
        // Predicated region
        $region25: #{tpu_custom_call.1} parent=11 // pred_check
          %p174 = pneg %p124
        $region26: #{tpu_custom_call.1} parent=11 // pred_check_branch
          %176 = sbr.rel (%p174) target = $region28
        $region27: #{tpu_custom_call.1} parent=11 // pred_region
          _
        $region28: #{tpu_custom_call.1} parent=11 // pred_fallthru
          _
      $region12: #{tpu_custom_call.1} parent=5 // pred_fallthru
        _
      %p177 = scmp.lt.s32.totalorder %s14, 2
      // Predicated region
      $region29: #{tpu_custom_call.1} parent=5 // pred_check
        %p178 = pneg %p177
      $region30: #{tpu_custom_call.1} parent=5 // pred_check_branch
        %180 = sbr.rel (%p178) target = $region32
      $region31: #{tpu_custom_call.1} parent=5 // pred_region
        // Predicated region
        $region33: #{tpu_custom_call.1} parent=31 // pred_check
          %p181 = pneg %p34
        $region34: #{tpu_custom_call.1} parent=31 // pred_check_branch
          %183 = sbr.rel (%p181) target = $region36
        $region35: #{tpu_custom_call.1} parent=31 // pred_region
          %s184 = smul.u32 32, %s14
          %p185 = scmp.lt.s32.totalorder %s184, 63
          %s186 = scalar_select %p185, %s184, 63
          %s187 = smul.addr %s186, 3
          %s188 = smul.addr %s187, 4
          %s189 = scalar_lea.vmem %s0, %s188
          %s190 = smul.u32 32, %s14
        $region36: #{tpu_custom_call.1} parent=31 // pred_fallthru
          _
      $region32: #{tpu_custom_call.1} parent=5 // pred_fallthru
        _
      %p191 = scmp.le.s32.totalorder 1, %s14
      %p192 = scmp.lt.s32.totalorder %s14, 3
      %p193 = pnand %p191, %p192
      %p194 = pneg %p193
      // Predicated region
      $region37: #{tpu_custom_call.1} parent=5 // pred_check
        _
      $region38: #{tpu_custom_call.1} parent=5 // pred_check_branch
        %196 = sbr.rel (%p193) target = $region40
      $region39: #{tpu_custom_call.1} parent=5 // pred_region
        %s197 = ssub.s32 %s14, 1
        %s198 = smul.u32 32, %s19
        %p199 = scmp.lt.s32.totalorder %s198, 63
        %s200 = scalar_select %p199, %s198, 63
        %s201 = smul.addr %s200, 3
        %s202 = smul.addr %s201, 4
        %s203 = scalar_lea.vmem %s0, %s202
        %p204 = pneg %p40
        %p205 = pneg %p37
        %p206 = pneg %p61
        %p207 = pneg %p58
        %p208 = pneg %p82
        %p209 = pneg %p79
        %p210 = pneg %p103
        %p211 = pneg %p100
        %p212 = pneg %p124
        %p213 = pneg %p121
        %p214 = pneg %p150
        %p215 = pneg %p147
        %s216 = sand.u32 %s137, 1
        %s217 = scalar_lea.sflag [#allocation3], %s216
        %s218 = sand.u32 %s137, 1
        %s219 = smul.addr %s218, 256
        %s220 = scalar_lea.vmem [#allocation2], %s219
        %s221 = smul.u32 32, %s19
        %p222 = scmp.lt.s32.totalorder %s221, 63
        %s223 = scalar_select %p222, %s221, 63
        %s224 = smul.addr %s223, 3
        %s225 = smul.addr %s224, 4
        %s226 = scalar_lea.vmem %s0, %s225
        %s227 = smul.u32 32, %s19
        %s228 = smul.u32 32, %s19
        %v230 = vld [vmem:[%s226] sm:$0xff]
        %v231 = vld [vmem:[%s226 + $0x8] sm:$0xf]
        %v232 = vld [vmem:[%s226 + $0xc] sm:$0xff]
        %v233 = vld [vmem:[%s226 + $0x14] sm:$0xf]
        %v234 = vld [vmem:[%s226 + $0x18] sm:$0xff]
        %v235 = vld [vmem:[%s226 + $0x20] sm:$0xf]
        %v236 = vld [vmem:[%s226 + $0x24] sm:$0xff]
        %v237 = vld [vmem:[%s226 + $0x2c] sm:$0xf]
        %v238 = vld [vmem:[%s226 + $0x30] sm:$0xff]
        %v239 = vld [vmem:[%s226 + $0x38] sm:$0xf]
        %v240 = vld [vmem:[%s226 + $0x3c] sm:$0xff]
        %v241 = vld [vmem:[%s226 + $0x44] sm:$0xf]
        %v242 = vld [vmem:[%s226 + $0x48] sm:$0xff]
        %v243 = vld [vmem:[%s226 + $0x50] sm:$0xf]
        %v244 = vld [vmem:[%s226 + $0x54] sm:$0xff]
        %v245 = vld [vmem:[%s226 + $0x5c] sm:$0xf]
        %v246 = vld [vmem:[%s226 + $0x60] sm:$0xff]
        %v247 = vld [vmem:[%s226 + $0x68] sm:$0xf]
        %v248 = vld [vmem:[%s226 + $0x6c] sm:$0xff]
        %v249 = vld [vmem:[%s226 + $0x74] sm:$0xf]
        %v250 = vld [vmem:[%s226 + $0x78] sm:$0xff]
        %v251 = vld [vmem:[%s226 + $0x80] sm:$0xf]
        %v252 = vld [vmem:[%s226 + $0x84] sm:$0xff]
        %v253 = vld [vmem:[%s226 + $0x8c] sm:$0xf]
        %v254 = vld [vmem:[%s226 + $0x90] sm:$0xff]
        %v255 = vld [vmem:[%s226 + $0x98] sm:$0xf]
        %v256 = vld [vmem:[%s226 + $0x9c] sm:$0xff]
        %v257 = vld [vmem:[%s226 + $0xa4] sm:$0xf]
        %v258 = vld [vmem:[%s226 + $0xa8] sm:$0xff]
        %v259 = vld [vmem:[%s226 + $0xb0] sm:$0xf]
        %v260 = vld [vmem:[%s226 + $0xb4] sm:$0xff]
        %v261 = vld [vmem:[%s226 + $0xbc] sm:$0xf]
        %v262 = vld [vmem:[%s226 + $0xc0] sm:$0xff]
        %v263 = vld [vmem:[%s226 + $0xc8] sm:$0xf]
        %v264 = vld [vmem:[%s226 + $0xcc] sm:$0xff]
        %v265 = vld [vmem:[%s226 + $0xd4] sm:$0xf]
        %v266 = vld [vmem:[%s226 + $0xd8] sm:$0xff]
        %v267 = vld [vmem:[%s226 + $0xe0] sm:$0xf]
        %v268 = vld [vmem:[%s226 + $0xe4] sm:$0xff]
        %v269 = vld [vmem:[%s226 + $0xec] sm:$0xf]
        %v270 = vld [vmem:[%s226 + $0xf0] sm:$0xff]
        %v271 = vld [vmem:[%s226 + $0xf8] sm:$0xf]
        %v272 = vld [vmem:[%s226 + $0xfc] sm:$0xff]
        %v273 = vld [vmem:[%s226 + $0x104] sm:$0xf]
        %v274 = vld [vmem:[%s226 + $0x108] sm:$0xff]
        %v275 = vld [vmem:[%s226 + $0x110] sm:$0xf]
        %v276 = vld [vmem:[%s226 + $0x114] sm:$0xff]
        %v277 = vld [vmem:[%s226 + $0x11c] sm:$0xf]
        %v278 = vld [vmem:[%s226 + $0x120] sm:$0xff]
        %v279 = vld [vmem:[%s226 + $0x128] sm:$0xf]
        %v280 = vld [vmem:[%s226 + $0x12c] sm:$0xff]
        %v281 = vld [vmem:[%s226 + $0x134] sm:$0xf]
        %v282 = vld [vmem:[%s226 + $0x138] sm:$0xff]
        %v283 = vld [vmem:[%s226 + $0x140] sm:$0xf]
        %v284 = vld [vmem:[%s226 + $0x144] sm:$0xff]
        %v285 = vld [vmem:[%s226 + $0x14c] sm:$0xf]
        %v286 = vld [vmem:[%s226 + $0x150] sm:$0xff]
        %v287 = vld [vmem:[%s226 + $0x158] sm:$0xf]
        %v288 = vld [vmem:[%s226 + $0x15c] sm:$0xff]
        %v289 = vld [vmem:[%s226 + $0x164] sm:$0xf]
        %v290 = vld [vmem:[%s226 + $0x168] sm:$0xff]
        %v291 = vld [vmem:[%s226 + $0x170] sm:$0xf]
        %v292 = vld [vmem:[%s226 + $0x174] sm:$0xff]
        %v293 = vld [vmem:[%s226 + $0x17c] sm:$0xf]
        %v294 = vld [vmem:[%s1] sm:$0xf]
        %v295 = vld [vmem:[%s1 + $0x4] sm:$0xf]
        %v296 = vld [vmem:[%s1 + $0x8] sm:$0xf]
        %v297 = vld [vmem:[%s1 + $0xc] sm:$0xf]
        %v298 = vld [vmem:[%s1 + $0x10] sm:$0xf]
        %v299 = vld [vmem:[%s1 + $0x14] sm:$0xf]
        %v300 = vld [vmem:[%s1 + $0x18] sm:$0xf]
        %v301 = vld [vmem:[%s1 + $0x1c] sm:$0xf]
        %v302 = vld [vmem:[%s1 + $0x20] sm:$0xf]
        %v303 = vld [vmem:[%s1 + $0x24] sm:$0xf]
        %v304 = vld [vmem:[%s1 + $0x28] sm:$0xf]
        %v305 = vld [vmem:[%s1 + $0x2c] sm:$0xf]
        %v306 = vld [vmem:[%s1 + $0x30] sm:$0xf]
        %v307 = vld [vmem:[%s1 + $0x34] sm:$0xf]
        %v308 = vld [vmem:[%s1 + $0x38] sm:$0xf]
        %v309 = vld [vmem:[%s1 + $0x3c] sm:$0xf]
        %v310 = vld [vmem:[%s1 + $0x40] sm:$0xf]
        %v311 = vld [vmem:[%s1 + $0x44] sm:$0xf]
        %v312 = vld [vmem:[%s1 + $0x48] sm:$0xf]
        %v313 = vld [vmem:[%s1 + $0x4c] sm:$0xf]
        %v314 = vld [vmem:[%s1 + $0x50] sm:$0xf]
        %v315 = vld [vmem:[%s1 + $0x54] sm:$0xf]
        %v316 = vld [vmem:[%s1 + $0x58] sm:$0xf]
        %v317 = vld [vmem:[%s1 + $0x5c] sm:$0xf]
        %v318 = vld [vmem:[%s1 + $0x60] sm:$0xf]
        %v319 = vld [vmem:[%s1 + $0x64] sm:$0xf]
        %v320 = vld [vmem:[%s1 + $0x68] sm:$0xf]
        %v321 = vld [vmem:[%s1 + $0x6c] sm:$0xf]
        %v322 = vld [vmem:[%s1 + $0x70] sm:$0xf]
        %v323 = vld [vmem:[%s1 + $0x74] sm:$0xf]
        %v324 = vld [vmem:[%s1 + $0x78] sm:$0xf]
        %v325 = vld [vmem:[%s1 + $0x7c] sm:$0xf]
        %v326 = vld [vmem:[%s1 + $0x80] sm:$0xf]
        %v327 = vld [vmem:[%s1 + $0x84] sm:$0xf]
        %v328 = vld [vmem:[%s1 + $0x88] sm:$0xf]
        %v329 = vld [vmem:[%s1 + $0x8c] sm:$0xf]
        %v330 = vld [vmem:[%s2] sm:$0x1]
        %v332 = vlaneseq
        %v333 = vshrl.u32 %v332, 7
        %v334 = vsub.s32 0, %v333
        %v335 = vrot.slane %v330, %v334
        %v401 = vunpack.c.l.b16 %v230
        %v402 = vunpack.c.h.b16 %v230
        %v403 = vunpack.c.l.b16 %v231
        %v404 = vunpack.c.l.b16 %v232
        %v405 = vunpack.c.h.b16 %v232
        %v406 = vunpack.c.l.b16 %v233
        %v407 = vunpack.c.l.b16 %v234
        %v408 = vunpack.c.h.b16 %v234
        %v409 = vunpack.c.l.b16 %v235
        %v410 = vunpack.c.l.b16 %v236
        %v411 = vunpack.c.h.b16 %v236
        %v412 = vunpack.c.l.b16 %v237
        %v413 = vunpack.c.l.b16 %v238
        %v414 = vunpack.c.h.b16 %v238
        %v415 = vunpack.c.l.b16 %v239
        %v416 = vunpack.c.l.b16 %v240
        %v417 = vunpack.c.h.b16 %v240
        %v418 = vunpack.c.l.b16 %v241
        %v419 = vunpack.c.l.b16 %v242
        %v420 = vunpack.c.h.b16 %v242
        %v421 = vunpack.c.l.b16 %v243
        %v422 = vunpack.c.l.b16 %v244
        %v423 = vunpack.c.h.b16 %v244
        %v424 = vunpack.c.l.b16 %v245
        %v425 = vunpack.c.l.b16 %v246
        %v426 = vunpack.c.h.b16 %v246
        %v427 = vunpack.c.l.b16 %v247
        %v428 = vunpack.c.l.b16 %v248
        %v429 = vunpack.c.h.b16 %v248
        %v430 = vunpack.c.l.b16 %v249
        %v431 = vunpack.c.l.b16 %v250
        %v432 = vunpack.c.h.b16 %v250
        %v433 = vunpack.c.l.b16 %v251
        %v434 = vunpack.c.l.b16 %v252
        %v435 = vunpack.c.h.b16 %v252
        %v436 = vunpack.c.l.b16 %v253
        %v437 = vunpack.c.l.b16 %v254
        %v438 = vunpack.c.h.b16 %v254
        %v439 = vunpack.c.l.b16 %v255
        %v440 = vunpack.c.l.b16 %v256
        %v441 = vunpack.c.h.b16 %v256
        %v442 = vunpack.c.l.b16 %v257
        %v443 = vunpack.c.l.b16 %v258
        %v444 = vunpack.c.h.b16 %v258
        %v445 = vunpack.c.l.b16 %v259
        %v446 = vunpack.c.l.b16 %v260
        %v447 = vunpack.c.h.b16 %v260
        %v448 = vunpack.c.l.b16 %v261
        %v449 = vunpack.c.l.b16 %v262
        %v450 = vunpack.c.h.b16 %v262
        %v451 = vunpack.c.l.b16 %v263
        %v452 = vunpack.c.l.b16 %v264
        %v453 = vunpack.c.h.b16 %v264
        %v454 = vunpack.c.l.b16 %v265
        %v455 = vunpack.c.l.b16 %v266
        %v456 = vunpack.c.h.b16 %v266
        %v457 = vunpack.c.l.b16 %v267
        %v458 = vunpack.c.l.b16 %v268
        %v459 = vunpack.c.h.b16 %v268
        %v460 = vunpack.c.l.b16 %v269
        %v461 = vunpack.c.l.b16 %v270
        %v462 = vunpack.c.h.b16 %v270
        %v463 = vunpack.c.l.b16 %v271
        %v464 = vunpack.c.l.b16 %v272
        %v465 = vunpack.c.h.b16 %v272
        %v466 = vunpack.c.l.b16 %v273
        %v467 = vunpack.c.l.b16 %v274
        %v468 = vunpack.c.h.b16 %v274
        %v469 = vunpack.c.l.b16 %v275
        %v470 = vunpack.c.l.b16 %v276
        %v471 = vunpack.c.h.b16 %v276
        %v472 = vunpack.c.l.b16 %v277
        %v473 = vunpack.c.l.b16 %v278
        %v474 = vunpack.c.h.b16 %v278
        %v475 = vunpack.c.l.b16 %v279
        %v476 = vunpack.c.l.b16 %v280
        %v477 = vunpack.c.h.b16 %v280
        %v478 = vunpack.c.l.b16 %v281
        %v479 = vunpack.c.l.b16 %v282
        %v480 = vunpack.c.h.b16 %v282
        %v481 = vunpack.c.l.b16 %v283
        %v482 = vunpack.c.l.b16 %v284
        %v483 = vunpack.c.h.b16 %v284
        %v484 = vunpack.c.l.b16 %v285
        %v485 = vunpack.c.l.b16 %v286
        %v486 = vunpack.c.h.b16 %v286
        %v487 = vunpack.c.l.b16 %v287
        %v488 = vunpack.c.l.b16 %v288
        %v489 = vunpack.c.h.b16 %v288
        %v490 = vunpack.c.l.b16 %v289
        %v491 = vunpack.c.l.b16 %v290
        %v492 = vunpack.c.h.b16 %v290
        %v493 = vunpack.c.l.b16 %v291
        %v494 = vunpack.c.l.b16 %v292
        %v495 = vunpack.c.h.b16 %v292
        %v496 = vunpack.c.l.b16 %v293
        %v497 = vpack.c.b16 %v404, %v401
        %v498 = vpack.c.b16 %v405, %v402
        %v499 = vpack.c.b16 %v406, %v403
        %v500 = vpack.c.b16 %v410, %v407
        %v501 = vpack.c.b16 %v411, %v408
        %v502 = vpack.c.b16 %v412, %v409
        %v503 = vpack.c.b16 %v416, %v413
        %v504 = vpack.c.b16 %v417, %v414
        %v505 = vpack.c.b16 %v418, %v415
        %v506 = vpack.c.b16 %v422, %v419
        %v507 = vpack.c.b16 %v423, %v420
        %v508 = vpack.c.b16 %v424, %v421
        %v509 = vpack.c.b16 %v428, %v425
        %v510 = vpack.c.b16 %v429, %v426
        %v511 = vpack.c.b16 %v430, %v427
        %v512 = vpack.c.b16 %v434, %v431
        %v513 = vpack.c.b16 %v435, %v432
        %v514 = vpack.c.b16 %v436, %v433
        %v515 = vpack.c.b16 %v440, %v437
        %v516 = vpack.c.b16 %v441, %v438
        %v517 = vpack.c.b16 %v442, %v439
        %v518 = vpack.c.b16 %v446, %v443
        %v519 = vpack.c.b16 %v447, %v444
        %v520 = vpack.c.b16 %v448, %v445
        %v521 = vpack.c.b16 %v452, %v449
        %v522 = vpack.c.b16 %v453, %v450
        %v523 = vpack.c.b16 %v454, %v451
        %v524 = vpack.c.b16 %v458, %v455
        %v525 = vpack.c.b16 %v459, %v456
        %v526 = vpack.c.b16 %v460, %v457
        %v527 = vpack.c.b16 %v464, %v461
        %v528 = vpack.c.b16 %v465, %v462
        %v529 = vpack.c.b16 %v466, %v463
        %v530 = vpack.c.b16 %v470, %v467
        %v531 = vpack.c.b16 %v471, %v468
        %v532 = vpack.c.b16 %v472, %v469
        %v533 = vpack.c.b16 %v476, %v473
        %v534 = vpack.c.b16 %v477, %v474
        %v535 = vpack.c.b16 %v478, %v475
        %v536 = vpack.c.b16 %v482, %v479
        %v537 = vpack.c.b16 %v483, %v480
        %v538 = vpack.c.b16 %v484, %v481
        %v539 = vpack.c.b16 %v488, %v485
        %v540 = vpack.c.b16 %v489, %v486
        %v541 = vpack.c.b16 %v490, %v487
        %v542 = vpack.c.b16 %v494, %v491
        %v543 = vpack.c.b16 %v495, %v492
        %v544 = vpack.c.b16 %v496, %v493
        %v613 = vunpack.c.l.b16 %v294
        %v614 = vunpack.c.l.b16 %v295
        %v615 = vunpack.c.l.b16 %v296
        %v616 = vunpack.c.l.b16 %v297
        %v617 = vunpack.c.l.b16 %v298
        %v618 = vunpack.c.l.b16 %v299
        %v619 = vunpack.c.l.b16 %v300
        %v620 = vunpack.c.l.b16 %v301
        %v621 = vunpack.c.l.b16 %v302
        %v622 = vunpack.c.l.b16 %v303
        %v623 = vunpack.c.l.b16 %v304
        %v624 = vunpack.c.l.b16 %v305
        %v625 = vunpack.c.l.b16 %v306
        %v626 = vunpack.c.l.b16 %v307
        %v627 = vunpack.c.l.b16 %v308
        %v628 = vunpack.c.l.b16 %v309
        %v629 = vunpack.c.l.b16 %v310
        %v630 = vunpack.c.l.b16 %v311
        %v631 = vunpack.c.l.b16 %v312
        %v632 = vunpack.c.l.b16 %v313
        %v633 = vunpack.c.l.b16 %v314
        %v634 = vunpack.c.l.b16 %v315
        %v635 = vunpack.c.l.b16 %v316
        %v636 = vunpack.c.l.b16 %v317
        %v637 = vunpack.c.l.b16 %v318
        %v638 = vunpack.c.l.b16 %v319
        %v639 = vunpack.c.l.b16 %v320
        %v640 = vunpack.c.l.b16 %v321
        %v641 = vunpack.c.l.b16 %v322
        %v642 = vunpack.c.l.b16 %v323
        %v643 = vunpack.c.l.b16 %v324
        %v644 = vunpack.c.l.b16 %v325
        %v645 = vunpack.c.l.b16 %v326
        %v646 = vunpack.c.l.b16 %v327
        %v647 = vunpack.c.l.b16 %v328
        %v648 = vunpack.c.l.b16 %v329
        %v649 = vpack.c.b16 %v614, %v613
        %v650 = vpack.c.b16 %v616, %v615
        %v651 = vpack.c.b16 %v618, %v617
        %v652 = vpack.c.b16 %v620, %v619
        %v653 = vpack.c.b16 %v622, %v621
        %v654 = vpack.c.b16 %v624, %v623
        %v655 = vpack.c.b16 %v626, %v625
        %v656 = vpack.c.b16 %v628, %v627
        %v657 = vpack.c.b16 %v630, %v629
        %v658 = vpack.c.b16 %v632, %v631
        %v659 = vpack.c.b16 %v634, %v633
        %v660 = vpack.c.b16 %v636, %v635
        %v661 = vpack.c.b16 %v638, %v637
        %v662 = vpack.c.b16 %v640, %v639
        %v663 = vpack.c.b16 %v642, %v641
        %v664 = vpack.c.b16 %v644, %v643
        %v665 = vpack.c.b16 %v646, %v645
        %v666 = vpack.c.b16 %v648, %v647
        %vm685 = vcmask 261120
        %v687 = vsel %vm685, %v499, 0
        %v690 = vsel %vm685, %v502, 0
        %v693 = vsel %vm685, %v505, 0
        %v696 = vsel %vm685, %v508, 0
        %v699 = vsel %vm685, %v511, 0
        %v702 = vsel %vm685, %v514, 0
        %v705 = vsel %vm685, %v517, 0
        %v708 = vsel %vm685, %v520, 0
        %v711 = vsel %vm685, %v523, 0
        %v714 = vsel %vm685, %v526, 0
        %v717 = vsel %vm685, %v529, 0
        %v720 = vsel %vm685, %v532, 0
        %v723 = vsel %vm685, %v535, 0
        %v726 = vsel %vm685, %v538, 0
        %v729 = vsel %vm685, %v541, 0
        %v732 = vsel %vm685, %v544, 0
        %734 = vmatprep.subr.bf16.mxu0 0
        %735 = vmatpush1.bf16.msra.mxu0 %v649
        %736 = vmatprep.subr.bf16.mxu0 0
        %737 = vmatpush1.bf16.msra.mxu0 %v650
        %738 = vmatprep.subr.bf16.mxu0 0
        %739 = vmatpush1.bf16.msra.mxu0 %v651
        %740 = vmatprep.subr.bf16.mxu0 0
        %741 = vmatpush1.bf16.msra.mxu0 %v652
        %742 = vmatprep.subr.bf16.mxu0 0
        %743 = vmatpush1.bf16.msra.mxu0 %v653
        %744 = vmatprep.subr.bf16.mxu0 0
        %745 = vmatpush1.bf16.msra.mxu0 %v654
        %746 = vmatprep.subr.bf16.mxu0 0
        %747 = vmatpush1.bf16.msra.mxu0 %v655
        %748 = vmatprep.subr.bf16.mxu0 0
        %749 = vmatpush1.bf16.msra.mxu0 %v656
        %750 = vmatprep.subr.bf16.mxu0 0
        %751 = vmatpush1.bf16.msra.mxu0 %v657
        %752 = vmatprep.subr.bf16.mxu0 0
        %753 = vmatpush1.bf16.msra.mxu0 %v658
        %754 = vmatprep.subr.bf16.mxu0 0
        %755 = vmatpush1.bf16.msra.mxu0 %v659
        %756 = vmatprep.subr.bf16.mxu0 0
        %757 = vmatpush1.bf16.msra.mxu0 %v660
        %758 = vmatprep.subr.bf16.mxu0 0
        %759 = vmatpush1.bf16.msra.mxu0 %v661
        %760 = vmatprep.subr.bf16.mxu0 0
        %761 = vmatpush1.bf16.msra.mxu0 %v662
        %762 = vmatprep.subr.bf16.mxu0 0
        %763 = vmatpush1.bf16.msra.mxu0 %v663
        %764 = vmatprep.subr.bf16.mxu0 0
        %765 = vmatpush1.bf16.msra.mxu0 %v664
        %766 = vmatprep.mubr.bf16.mxu0 %v498
        %767 = vmatmul.mubr.bf16.gmra.mrb[0].mxu0 %v497
        %v768 = vpop.f32.mrb[0].mxu0
        %v769 = vadd.f32 %v335, %v768
        %v770 = vpop.f32.mrb[0].mxu0
        %v771 = vpop.f32.mrb[0].mxu0
        %v772 = vadd.f32 %v335, %v771
        %v773 = vpop.f32.mrb[0].mxu0
        %774 = vmatprep.mubr.bf16.mxu0 %v501
        %775 = vmatmul.mubr.bf16.gmra.mrb[0].mxu0 %v500
        %v776 = vpop.f32.mrb[0].mxu0
        %v777 = vadd.f32 %v335, %v776
        %v778 = vpop.f32.mrb[0].mxu0
        %v779 = vpop.f32.mrb[0].mxu0
        %v780 = vadd.f32 %v335, %v779
        %v781 = vpop.f32.mrb[0].mxu0
        %782 = vmatprep.mubr.bf16.mxu0 %v504
        %783 = vmatmul.mubr.bf16.gmra.mrb[0].mxu0 %v503
        %v784 = vpop.f32.mrb[0].mxu0
        %v785 = vadd.f32 %v335, %v784
        %v786 = vpop.f32.mrb[0].mxu0
        %v787 = vpop.f32.mrb[0].mxu0
        %v788 = vadd.f32 %v335, %v787
        %v789 = vpop.f32.mrb[0].mxu0
        %790 = vmatprep.mubr.bf16.mxu0 %v507
        %791 = vmatmul.mubr.bf16.gmra.mrb[0].mxu0 %v506
        %v792 = vpop.f32.mrb[0].mxu0
        %v793 = vadd.f32 %v335, %v792
        %v794 = vpop.f32.mrb[0].mxu0
        %v795 = vpop.f32.mrb[0].mxu0
        %v796 = vadd.f32 %v335, %v795
        %v797 = vpop.f32.mrb[0].mxu0
        %798 = vmatprep.mubr.bf16.mxu0 %v510
        %799 = vmatmul.mubr.bf16.gmra.mrb[0].mxu0 %v509
        %v800 = vpop.f32.mrb[0].mxu0
        %v801 = vadd.f32 %v335, %v800
        %v802 = vpop.f32.mrb[0].mxu0
        %v803 = vpop.f32.mrb[0].mxu0
        %v804 = vadd.f32 %v335, %v803
        %v805 = vpop.f32.mrb[0].mxu0
        %806 = vmatprep.mubr.bf16.mxu0 %v513
        %807 = vmatmul.mubr.bf16.gmra.mrb[0].mxu0 %v512
        %v808 = vpop.f32.mrb[0].mxu0
        %v809 = vadd.f32 %v335, %v808
        %v810 = vpop.f32.mrb[0].mxu0
        %v811 = vpop.f32.mrb[0].mxu0
        %v812 = vadd.f32 %v335, %v811
        %v813 = vpop.f32.mrb[0].mxu0
        %814 = vmatprep.mubr.bf16.mxu0 %v516
        %815 = vmatmul.mubr.bf16.gmra.mrb[0].mxu0 %v515
        %v816 = vpop.f32.mrb[0].mxu0
        %v817 = vadd.f32 %v335, %v816
        %v818 = vpop.f32.mrb[0].mxu0
        %v819 = vpop.f32.mrb[0].mxu0
        %v820 = vadd.f32 %v335, %v819
        %v821 = vpop.f32.mrb[0].mxu0
        %822 = vmatprep.mubr.bf16.mxu0 %v519
        %823 = vmatmul.mubr.bf16.gmra.mrb[0].mxu0 %v518
        %v824 = vpop.f32.mrb[0].mxu0
        %v825 = vadd.f32 %v335, %v824
        %v826 = vpop.f32.mrb[0].mxu0
        %v827 = vpop.f32.mrb[0].mxu0
        %v828 = vadd.f32 %v335, %v827
        %v829 = vpop.f32.mrb[0].mxu0
        %830 = vmatprep.mubr.bf16.mxu0 %v522
        %831 = vmatmul.mubr.bf16.gmra.mrb[0].mxu0 %v521
        %v832 = vpop.f32.mrb[0].mxu0
        %v833 = vadd.f32 %v335, %v832
        %v834 = vpop.f32.mrb[0].mxu0
        %v835 = vpop.f32.mrb[0].mxu0
        %v836 = vadd.f32 %v335, %v835
        %v837 = vpop.f32.mrb[0].mxu0
        %838 = vmatprep.mubr.bf16.mxu0 %v525
        %839 = vmatmul.mubr.bf16.gmra.mrb[0].mxu0 %v524
        %v840 = vpop.f32.mrb[0].mxu0
        %v841 = vadd.f32 %v335, %v840
        %v842 = vpop.f32.mrb[0].mxu0
        %v843 = vpop.f32.mrb[0].mxu0
        %v844 = vadd.f32 %v335, %v843
        %v845 = vpop.f32.mrb[0].mxu0
        %846 = vmatprep.mubr.bf16.mxu0 %v528
        %847 = vmatmul.mubr.bf16.gmra.mrb[0].mxu0 %v527
        %v848 = vpop.f32.mrb[0].mxu0
        %v849 = vadd.f32 %v335, %v848
        %v850 = vpop.f32.mrb[0].mxu0
        %v851 = vpop.f32.mrb[0].mxu0
        %v852 = vadd.f32 %v335, %v851
        %v853 = vpop.f32.mrb[0].mxu0
        %854 = vmatprep.mubr.bf16.mxu0 %v531
        %855 = vmatmul.mubr.bf16.gmra.mrb[0].mxu0 %v530
        %v856 = vpop.f32.mrb[0].mxu0
        %v857 = vadd.f32 %v335, %v856
        %v858 = vpop.f32.mrb[0].mxu0
        %v859 = vpop.f32.mrb[0].mxu0
        %v860 = vadd.f32 %v335, %v859
        %v861 = vpop.f32.mrb[0].mxu0
        %862 = vmatprep.mubr.bf16.mxu0 %v534
        %863 = vmatmul.mubr.bf16.gmra.mrb[0].mxu0 %v533
        %v864 = vpop.f32.mrb[0].mxu0
        %v865 = vadd.f32 %v335, %v864
        %v866 = vpop.f32.mrb[0].mxu0
        %v867 = vpop.f32.mrb[0].mxu0
        %v868 = vadd.f32 %v335, %v867
        %v869 = vpop.f32.mrb[0].mxu0
        %870 = vmatprep.mubr.bf16.mxu0 %v537
        %871 = vmatmul.mubr.bf16.gmra.mrb[0].mxu0 %v536
        %v872 = vpop.f32.mrb[0].mxu0
        %v873 = vadd.f32 %v335, %v872
        %v874 = vpop.f32.mrb[0].mxu0
        %v875 = vpop.f32.mrb[0].mxu0
        %v876 = vadd.f32 %v335, %v875
        %v877 = vpop.f32.mrb[0].mxu0
        %878 = vmatprep.mubr.bf16.mxu0 %v540
        %879 = vmatmul.mubr.bf16.gmra.mrb[0].mxu0 %v539
        %v880 = vpop.f32.mrb[0].mxu0
        %v881 = vadd.f32 %v335, %v880
        %v882 = vpop.f32.mrb[0].mxu0
        %v883 = vpop.f32.mrb[0].mxu0
        %v884 = vadd.f32 %v335, %v883
        %v885 = vpop.f32.mrb[0].mxu0
        %886 = vmatprep.mubr.bf16.mxu0 %v543
        %887 = vmatmul.mubr.bf16.gmra.mrb[0].mxu0 %v542
        %v888 = vpop.f32.mrb[0].mxu0
        %v889 = vadd.f32 %v335, %v888
        %v890 = vpop.f32.mrb[0].mxu0
        %v891 = vpop.f32.mrb[0].mxu0
        %v892 = vadd.f32 %v335, %v891
        %v893 = vpop.f32.mrb[0].mxu0
        %894 = vdwg.mxu0
        %895 = vmatprep.subr.bf16.mxu0 0
        %896 = vmatpush1.bf16.msra.mxu0 %v665
        %897 = vmatprep.subr.bf16.mxu0 0
        %898 = vmatpush1.bf16.msra.mxu0 %v666
        %899 = vmatprep.subr.bf16.mxu0 0
        %900 = vmatpush1.bf16.msra.mxu0 0
        %901 = vmatprep.subr.bf16.mxu0 0
        %902 = vmatpush1.bf16.msra.mxu0 0
        %903 = vmatprep.subr.bf16.mxu0 0
        %904 = vmatpush1.bf16.msra.mxu0 0
        %905 = vmatprep.subr.bf16.mxu0 0
        %906 = vmatpush1.bf16.msra.mxu0 0
        %907 = vmatprep.subr.bf16.mxu0 0
        %908 = vmatpush1.bf16.msra.mxu0 0
        %909 = vmatprep.subr.bf16.mxu0 0
        %910 = vmatpush1.bf16.msra.mxu0 0
        %911 = vmatprep.subr.bf16.mxu0 0
        %912 = vmatpush1.bf16.msra.mxu0 0
        %913 = vmatprep.subr.bf16.mxu0 0
        %914 = vmatpush1.bf16.msra.mxu0 0
        %915 = vmatprep.subr.bf16.mxu0 0
        %916 = vmatpush1.bf16.msra.mxu0 0
        %917 = vmatprep.subr.bf16.mxu0 0
        %918 = vmatpush1.bf16.msra.mxu0 0
        %919 = vmatprep.subr.bf16.mxu0 0
        %920 = vmatpush1.bf16.msra.mxu0 0
        %921 = vmatprep.subr.bf16.mxu0 0
        %922 = vmatpush1.bf16.msra.mxu0 0
        %923 = vmatprep.subr.bf16.mxu0 0
        %924 = vmatpush1.bf16.msra.mxu0 0
        %925 = vmatprep.subr.bf16.mxu0 0
        %926 = vmatpush1.bf16.msra.mxu0 0
        %927 = vmatprep.mubr.bf16.mxu0 0
        %928 = vmatmul.mubr.bf16.gmra.mrb[0].mxu0 %v687
        %v929 = vpop.f32.mrb[0].mxu0
        %v930 = vadd.f32 %v769, %v929
        %v931 = vpop.f32.mrb[0].mxu0
        %v932 = vpop.f32.mrb[0].mxu0
        %v933 = vadd.f32 %v772, %v932
        %v934 = vpop.f32.mrb[0].mxu0
        %935 = vmatprep.mubr.bf16.mxu0 0
        %936 = vmatmul.mubr.bf16.gmra.mrb[0].mxu0 %v690
        %v937 = vpop.f32.mrb[0].mxu0
        %v938 = vadd.f32 %v777, %v937
        %v939 = vpop.f32.mrb[0].mxu0
        %v940 = vpop.f32.mrb[0].mxu0
        %v941 = vadd.f32 %v780, %v940
        %v942 = vpop.f32.mrb[0].mxu0
        %943 = vmatprep.mubr.bf16.mxu0 0
        %944 = vmatmul.mubr.bf16.gmra.mrb[0].mxu0 %v693
        %v945 = vpop.f32.mrb[0].mxu0
        %v946 = vadd.f32 %v785, %v945
        %v947 = vpop.f32.mrb[0].mxu0
        %v948 = vpop.f32.mrb[0].mxu0
        %v949 = vadd.f32 %v788, %v948
        %v950 = vpop.f32.mrb[0].mxu0
        %951 = vmatprep.mubr.bf16.mxu0 0
        %952 = vmatmul.mubr.bf16.gmra.mrb[0].mxu0 %v696
        %v953 = vpop.f32.mrb[0].mxu0
        %v954 = vadd.f32 %v793, %v953
        %v955 = vpop.f32.mrb[0].mxu0
        %v956 = vpop.f32.mrb[0].mxu0
        %v957 = vadd.f32 %v796, %v956
        %v958 = vpop.f32.mrb[0].mxu0
        %959 = vmatprep.mubr.bf16.mxu0 0
        %960 = vmatmul.mubr.bf16.gmra.mrb[0].mxu0 %v699
        %v961 = vpop.f32.mrb[0].mxu0
        %v962 = vadd.f32 %v801, %v961
        %v963 = vpop.f32.mrb[0].mxu0
        %v964 = vpop.f32.mrb[0].mxu0
        %v965 = vadd.f32 %v804, %v964
        %v966 = vpop.f32.mrb[0].mxu0
        %967 = vmatprep.mubr.bf16.mxu0 0
        %968 = vmatmul.mubr.bf16.gmra.mrb[0].mxu0 %v702
        %v969 = vpop.f32.mrb[0].mxu0
        %v970 = vadd.f32 %v809, %v969
        %v971 = vpop.f32.mrb[0].mxu0
        %v972 = vpop.f32.mrb[0].mxu0
        %v973 = vadd.f32 %v812, %v972
        %v974 = vpop.f32.mrb[0].mxu0
        %975 = vmatprep.mubr.bf16.mxu0 0
        %976 = vmatmul.mubr.bf16.gmra.mrb[0].mxu0 %v705
        %v977 = vpop.f32.mrb[0].mxu0
        %v978 = vadd.f32 %v817, %v977
        %v979 = vpop.f32.mrb[0].mxu0
        %v980 = vpop.f32.mrb[0].mxu0
        %v981 = vadd.f32 %v820, %v980
        %v982 = vpop.f32.mrb[0].mxu0
        %983 = vmatprep.mubr.bf16.mxu0 0
        %984 = vmatmul.mubr.bf16.gmra.mrb[0].mxu0 %v708
        %v985 = vpop.f32.mrb[0].mxu0
        %v986 = vadd.f32 %v825, %v985
        %v987 = vpop.f32.mrb[0].mxu0
        %v988 = vpop.f32.mrb[0].mxu0
        %v989 = vadd.f32 %v828, %v988
        %v990 = vpop.f32.mrb[0].mxu0
        %991 = vmatprep.mubr.bf16.mxu0 0
        %992 = vmatmul.mubr.bf16.gmra.mrb[0].mxu0 %v711
        %v993 = vpop.f32.mrb[0].mxu0
        %v994 = vadd.f32 %v833, %v993
        %v995 = vpop.f32.mrb[0].mxu0
        %v996 = vpop.f32.mrb[0].mxu0
        %v997 = vadd.f32 %v836, %v996
        %v998 = vpop.f32.mrb[0].mxu0
        %999 = vmatprep.mubr.bf16.mxu0 0
        %1000 = vmatmul.mubr.bf16.gmra.mrb[0].mxu0 %v714
        %v1001 = vpop.f32.mrb[0].mxu0
        %v1002 = vadd.f32 %v841, %v1001
        %v1003 = vpop.f32.mrb[0].mxu0
        %v1004 = vpop.f32.mrb[0].mxu0
        %v1005 = vadd.f32 %v844, %v1004
        %v1006 = vpop.f32.mrb[0].mxu0
        %1007 = vmatprep.mubr.bf16.mxu0 0
        %1008 = vmatmul.mubr.bf16.gmra.mrb[0].mxu0 %v717
        %v1009 = vpop.f32.mrb[0].mxu0
        %v1010 = vadd.f32 %v849, %v1009
        %v1011 = vpop.f32.mrb[0].mxu0
        %v1012 = vpop.f32.mrb[0].mxu0
        %v1013 = vadd.f32 %v852, %v1012
        %v1014 = vpop.f32.mrb[0].mxu0
        %1015 = vmatprep.mubr.bf16.mxu0 0
        %1016 = vmatmul.mubr.bf16.gmra.mrb[0].mxu0 %v720
        %v1017 = vpop.f32.mrb[0].mxu0
        %v1018 = vadd.f32 %v857, %v1017
        %v1019 = vpop.f32.mrb[0].mxu0
        %v1020 = vpop.f32.mrb[0].mxu0
        %v1021 = vadd.f32 %v860, %v1020
        %v1022 = vpop.f32.mrb[0].mxu0
        %1023 = vmatprep.mubr.bf16.mxu0 0
        %1024 = vmatmul.mubr.bf16.gmra.mrb[0].mxu0 %v723
        %v1025 = vpop.f32.mrb[0].mxu0
        %v1026 = vadd.f32 %v865, %v1025
        %v1027 = vpop.f32.mrb[0].mxu0
        %v1028 = vpop.f32.mrb[0].mxu0
        %v1029 = vadd.f32 %v868, %v1028
        %v1030 = vpop.f32.mrb[0].mxu0
        %1031 = vmatprep.mubr.bf16.mxu0 0
        %1032 = vmatmul.mubr.bf16.gmra.mrb[0].mxu0 %v726
        %v1033 = vpop.f32.mrb[0].mxu0
        %v1034 = vadd.f32 %v873, %v1033
        %v1035 = vpop.f32.mrb[0].mxu0
        %v1036 = vpop.f32.mrb[0].mxu0
        %v1037 = vadd.f32 %v876, %v1036
        %v1038 = vpop.f32.mrb[0].mxu0
        %1039 = vmatprep.mubr.bf16.mxu0 0
        %1040 = vmatmul.mubr.bf16.gmra.mrb[0].mxu0 %v729
        %v1041 = vpop.f32.mrb[0].mxu0
        %v1042 = vadd.f32 %v881, %v1041
        %v1043 = vpop.f32.mrb[0].mxu0
        %v1044 = vpop.f32.mrb[0].mxu0
        %v1045 = vadd.f32 %v884, %v1044
        %v1046 = vpop.f32.mrb[0].mxu0
        %1047 = vmatprep.mubr.bf16.mxu0 0
        %1048 = vmatmul.mubr.bf16.gmra.mrb[0].mxu0 %v732
        %v1049 = vpop.f32.mrb[0].mxu0
        %v1050 = vadd.f32 %v889, %v1049
        %v1051 = vpop.f32.mrb[0].mxu0
        %v1052 = vpop.f32.mrb[0].mxu0
        %v1053 = vadd.f32 %v892, %v1052
        %v1054 = vpop.f32.mrb[0].mxu0
        %1055 = vdwg.mxu0
        %v1056 = vmax.f32 %v930, 0.0
        %v1057 = vmax.f32 %v933, 0.0
        %v1058 = vmax.f32 %v938, 0.0
        %v1059 = vmax.f32 %v941, 0.0
        %v1060 = vmax.f32 %v946, 0.0
        %v1061 = vmax.f32 %v949, 0.0
        %v1062 = vmax.f32 %v954, 0.0
        %v1063 = vmax.f32 %v957, 0.0
        %v1064 = vmax.f32 %v962, 0.0
        %v1065 = vmax.f32 %v965, 0.0
        %v1066 = vmax.f32 %v970, 0.0
        %v1067 = vmax.f32 %v973, 0.0
        %v1068 = vmax.f32 %v978, 0.0
        %v1069 = vmax.f32 %v981, 0.0
        %v1070 = vmax.f32 %v986, 0.0
        %v1071 = vmax.f32 %v989, 0.0
        %v1072 = vmax.f32 %v994, 0.0
        %v1073 = vmax.f32 %v997, 0.0
        %v1074 = vmax.f32 %v1002, 0.0
        %v1075 = vmax.f32 %v1005, 0.0
        %v1076 = vmax.f32 %v1010, 0.0
        %v1077 = vmax.f32 %v1013, 0.0
        %v1078 = vmax.f32 %v1018, 0.0
        %v1079 = vmax.f32 %v1021, 0.0
        %v1080 = vmax.f32 %v1026, 0.0
        %v1081 = vmax.f32 %v1029, 0.0
        %v1082 = vmax.f32 %v1034, 0.0
        %v1083 = vmax.f32 %v1037, 0.0
        %v1084 = vmax.f32 %v1042, 0.0
        %v1085 = vmax.f32 %v1045, 0.0
        %v1086 = vmax.f32 %v1050, 0.0
        %v1087 = vmax.f32 %v1053, 0.0
        %v1088 = vpack.c.bf16 %v1057, %v1056
        %v1089 = vpack.c.bf16 %v1059, %v1058
        %v1090 = vpack.c.bf16 %v1061, %v1060
        %v1091 = vpack.c.bf16 %v1063, %v1062
        %v1092 = vpack.c.bf16 %v1065, %v1064
        %v1093 = vpack.c.bf16 %v1067, %v1066
        %v1094 = vpack.c.bf16 %v1069, %v1068
        %v1095 = vpack.c.bf16 %v1071, %v1070
        %v1096 = vpack.c.bf16 %v1073, %v1072
        %v1097 = vpack.c.bf16 %v1075, %v1074
        %v1098 = vpack.c.bf16 %v1077, %v1076
        %v1099 = vpack.c.bf16 %v1079, %v1078
        %v1100 = vpack.c.bf16 %v1081, %v1080
        %v1101 = vpack.c.bf16 %v1083, %v1082
        %v1102 = vpack.c.bf16 %v1085, %v1084
        %v1103 = vpack.c.bf16 %v1087, %v1086
        %v1104 = vld [vmem:[%s3] sm:$0xf]
        %v1105 = vld [vmem:[%s3 + $0x4] sm:$0xf]
        %v1106 = vld [vmem:[%s3 + $0x8] sm:$0xf]
        %v1107 = vld [vmem:[%s3 + $0xc] sm:$0xf]
        %v1108 = vld [vmem:[%s3 + $0x10] sm:$0xf]
        %v1109 = vld [vmem:[%s3 + $0x14] sm:$0xf]
        %v1110 = vld [vmem:[%s3 + $0x18] sm:$0xf]
        %v1111 = vld [vmem:[%s3 + $0x1c] sm:$0xf]
        %v1112 = vld [vmem:[%s3 + $0x20] sm:$0xf]
        %v1113 = vld [vmem:[%s3 + $0x24] sm:$0xf]
        %v1114 = vld [vmem:[%s3 + $0x28] sm:$0xf]
        %v1115 = vld [vmem:[%s3 + $0x2c] sm:$0xf]
        %v1116 = vld [vmem:[%s3 + $0x30] sm:$0xf]
        %v1117 = vld [vmem:[%s3 + $0x34] sm:$0xf]
        %v1118 = vld [vmem:[%s3 + $0x38] sm:$0xf]
        %v1119 = vld [vmem:[%s3 + $0x3c] sm:$0xf]
        %v1120 = vld [vmem:[%s4] sm:$0x1]
        %v1122 = vlaneseq
        %v1123 = vshrl.u32 %v1122, 7
        %v1124 = vsub.s32 0, %v1123
        %v1125 = vrot.slane %v1120, %v1124
        %v1143 = vunpack.c.l.b16 %v1104
        %v1144 = vunpack.c.l.b16 %v1105
        %v1145 = vunpack.c.l.b16 %v1106
        %v1146 = vunpack.c.l.b16 %v1107
        %v1147 = vunpack.c.l.b16 %v1108
        %v1148 = vunpack.c.l.b16 %v1109
        %v1149 = vunpack.c.l.b16 %v1110
        %v1150 = vunpack.c.l.b16 %v1111
        %v1151 = vunpack.c.l.b16 %v1112
        %v1152 = vunpack.c.l.b16 %v1113
        %v1153 = vunpack.c.l.b16 %v1114
        %v1154 = vunpack.c.l.b16 %v1115
        %v1155 = vunpack.c.l.b16 %v1116
        %v1156 = vunpack.c.l.b16 %v1117
        %v1157 = vunpack.c.l.b16 %v1118
        %v1158 = vunpack.c.l.b16 %v1119
        %v1159 = vpack.c.b16 %v1144, %v1143
        %v1160 = vpack.c.b16 %v1146, %v1145
        %v1161 = vpack.c.b16 %v1148, %v1147
        %v1162 = vpack.c.b16 %v1150, %v1149
        %v1163 = vpack.c.b16 %v1152, %v1151
        %v1164 = vpack.c.b16 %v1154, %v1153
        %v1165 = vpack.c.b16 %v1156, %v1155
        %v1166 = vpack.c.b16 %v1158, %v1157
        %1175 = vmatprep.subr.bf16.mxu0 0
        %1176 = vmatpush1.bf16.msra.mxu0 %v1159
        %1177 = vmatprep.subr.bf16.mxu0 0
        %1178 = vmatpush1.bf16.msra.mxu0 %v1160
        %1179 = vmatprep.subr.bf16.mxu0 0
        %1180 = vmatpush1.bf16.msra.mxu0 %v1161
        %1181 = vmatprep.subr.bf16.mxu0 0
        %1182 = vmatpush1.bf16.msra.mxu0 %v1162
        %1183 = vmatprep.subr.bf16.mxu0 0
        %1184 = vmatpush1.bf16.msra.mxu0 %v1163
        %1185 = vmatprep.subr.bf16.mxu0 0
        %1186 = vmatpush1.bf16.msra.mxu0 %v1164
        %1187 = vmatprep.subr.bf16.mxu0 0
        %1188 = vmatpush1.bf16.msra.mxu0 %v1165
        %1189 = vmatprep.subr.bf16.mxu0 0
        %1190 = vmatpush1.bf16.msra.mxu0 %v1166
        %1191 = vmatprep.subr.bf16.mxu0 0
        %1192 = vmatpush1.bf16.msra.mxu0 0
        %1193 = vmatprep.subr.bf16.mxu0 0
        %1194 = vmatpush1.bf16.msra.mxu0 0
        %1195 = vmatprep.subr.bf16.mxu0 0
        %1196 = vmatpush1.bf16.msra.mxu0 0
        %1197 = vmatprep.subr.bf16.mxu0 0
        %1198 = vmatpush1.bf16.msra.mxu0 0
        %1199 = vmatprep.subr.bf16.mxu0 0
        %1200 = vmatpush1.bf16.msra.mxu0 0
        %1201 = vmatprep.subr.bf16.mxu0 0
        %1202 = vmatpush1.bf16.msra.mxu0 0
        %1203 = vmatprep.subr.bf16.mxu0 0
        %1204 = vmatpush1.bf16.msra.mxu0 0
        %1205 = vmatprep.subr.bf16.mxu0 0
        %1206 = vmatpush1.bf16.msra.mxu0 0
        %1207 = vmatprep.mubr.bf16.mxu0 0
        %1208 = vmatmul.mubr.bf16.gmra.mrb[0].mxu0 %v1088
        %v1209 = vpop.f32.mrb[0].mxu0
        %v1210 = vadd.f32 %v1125, %v1209
        %v1211 = vpop.f32.mrb[0].mxu0
        %v1212 = vpop.f32.mrb[0].mxu0
        %v1213 = vadd.f32 %v1125, %v1212
        %v1214 = vpop.f32.mrb[0].mxu0
        %1215 = vmatprep.mubr.bf16.mxu0 0
        %1216 = vmatmul.mubr.bf16.gmra.mrb[0].mxu0 %v1089
        %v1217 = vpop.f32.mrb[0].mxu0
        %v1218 = vadd.f32 %v1125, %v1217
        %v1219 = vpop.f32.mrb[0].mxu0
        %v1220 = vpop.f32.mrb[0].mxu0
        %v1221 = vadd.f32 %v1125, %v1220
        %v1222 = vpop.f32.mrb[0].mxu0
        %1223 = vmatprep.mubr.bf16.mxu0 0
        %1224 = vmatmul.mubr.bf16.gmra.mrb[0].mxu0 %v1090
        %v1225 = vpop.f32.mrb[0].mxu0
        %v1226 = vadd.f32 %v1125, %v1225
        %v1227 = vpop.f32.mrb[0].mxu0
        %v1228 = vpop.f32.mrb[0].mxu0
        %v1229 = vadd.f32 %v1125, %v1228
        %v1230 = vpop.f32.mrb[0].mxu0
        %1231 = vmatprep.mubr.bf16.mxu0 0
        %1232 = vmatmul.mubr.bf16.gmra.mrb[0].mxu0 %v1091
        %v1233 = vpop.f32.mrb[0].mxu0
        %v1234 = vadd.f32 %v1125, %v1233
        %v1235 = vpop.f32.mrb[0].mxu0
        %v1236 = vpop.f32.mrb[0].mxu0
        %v1237 = vadd.f32 %v1125, %v1236
        %v1238 = vpop.f32.mrb[0].mxu0
        %1239 = vmatprep.mubr.bf16.mxu0 0
        %1240 = vmatmul.mubr.bf16.gmra.mrb[0].mxu0 %v1092
        %v1241 = vpop.f32.mrb[0].mxu0
        %v1242 = vadd.f32 %v1125, %v1241
        %v1243 = vpop.f32.mrb[0].mxu0
        %v1244 = vpop.f32.mrb[0].mxu0
        %v1245 = vadd.f32 %v1125, %v1244
        %v1246 = vpop.f32.mrb[0].mxu0
        %1247 = vmatprep.mubr.bf16.mxu0 0
        %1248 = vmatmul.mubr.bf16.gmra.mrb[0].mxu0 %v1093
        %v1249 = vpop.f32.mrb[0].mxu0
        %v1250 = vadd.f32 %v1125, %v1249
        %v1251 = vpop.f32.mrb[0].mxu0
        %v1252 = vpop.f32.mrb[0].mxu0
        %v1253 = vadd.f32 %v1125, %v1252
        %v1254 = vpop.f32.mrb[0].mxu0
        %1255 = vmatprep.mubr.bf16.mxu0 0
        %1256 = vmatmul.mubr.bf16.gmra.mrb[0].mxu0 %v1094
        %v1257 = vpop.f32.mrb[0].mxu0
        %v1258 = vadd.f32 %v1125, %v1257
        %v1259 = vpop.f32.mrb[0].mxu0
        %v1260 = vpop.f32.mrb[0].mxu0
        %v1261 = vadd.f32 %v1125, %v1260
        %v1262 = vpop.f32.mrb[0].mxu0
        %1263 = vmatprep.mubr.bf16.mxu0 0
        %1264 = vmatmul.mubr.bf16.gmra.mrb[0].mxu0 %v1095
        %v1265 = vpop.f32.mrb[0].mxu0
        %v1266 = vadd.f32 %v1125, %v1265
        %v1267 = vpop.f32.mrb[0].mxu0
        %v1268 = vpop.f32.mrb[0].mxu0
        %v1269 = vadd.f32 %v1125, %v1268
        %v1270 = vpop.f32.mrb[0].mxu0
        %1271 = vmatprep.mubr.bf16.mxu0 0
        %1272 = vmatmul.mubr.bf16.gmra.mrb[0].mxu0 %v1096
        %v1273 = vpop.f32.mrb[0].mxu0
        %v1274 = vadd.f32 %v1125, %v1273
        %v1275 = vpop.f32.mrb[0].mxu0
        %v1276 = vpop.f32.mrb[0].mxu0
        %v1277 = vadd.f32 %v1125, %v1276
        %v1278 = vpop.f32.mrb[0].mxu0
        %1279 = vmatprep.mubr.bf16.mxu0 0
        %1280 = vmatmul.mubr.bf16.gmra.mrb[0].mxu0 %v1097
        %v1281 = vpop.f32.mrb[0].mxu0
        %v1282 = vadd.f32 %v1125, %v1281
        %v1283 = vpop.f32.mrb[0].mxu0
        %v1284 = vpop.f32.mrb[0].mxu0
        %v1285 = vadd.f32 %v1125, %v1284
        %v1286 = vpop.f32.mrb[0].mxu0
        %1287 = vmatprep.mubr.bf16.mxu0 0
        %1288 = vmatmul.mubr.bf16.gmra.mrb[0].mxu0 %v1098
        %v1289 = vpop.f32.mrb[0].mxu0
        %v1290 = vadd.f32 %v1125, %v1289
        %v1291 = vpop.f32.mrb[0].mxu0
        %v1292 = vpop.f32.mrb[0].mxu0
        %v1293 = vadd.f32 %v1125, %v1292
        %v1294 = vpop.f32.mrb[0].mxu0
        %1295 = vmatprep.mubr.bf16.mxu0 0
        %1296 = vmatmul.mubr.bf16.gmra.mrb[0].mxu0 %v1099
        %v1297 = vpop.f32.mrb[0].mxu0
        %v1298 = vadd.f32 %v1125, %v1297
        %v1299 = vpop.f32.mrb[0].mxu0
        %v1300 = vpop.f32.mrb[0].mxu0
        %v1301 = vadd.f32 %v1125, %v1300
        %v1302 = vpop.f32.mrb[0].mxu0
        %1303 = vmatprep.mubr.bf16.mxu0 0
        %1304 = vmatmul.mubr.bf16.gmra.mrb[0].mxu0 %v1100
        %v1305 = vpop.f32.mrb[0].mxu0
        %v1306 = vadd.f32 %v1125, %v1305
        %v1307 = vpop.f32.mrb[0].mxu0
        %v1308 = vpop.f32.mrb[0].mxu0
        %v1309 = vadd.f32 %v1125, %v1308
        %v1310 = vpop.f32.mrb[0].mxu0
        %1311 = vmatprep.mubr.bf16.mxu0 0
        %1312 = vmatmul.mubr.bf16.gmra.mrb[0].mxu0 %v1101
        %v1313 = vpop.f32.mrb[0].mxu0
        %v1314 = vadd.f32 %v1125, %v1313
        %v1315 = vpop.f32.mrb[0].mxu0
        %v1316 = vpop.f32.mrb[0].mxu0
        %v1317 = vadd.f32 %v1125, %v1316
        %v1318 = vpop.f32.mrb[0].mxu0
        %1319 = vmatprep.mubr.bf16.mxu0 0
        %1320 = vmatmul.mubr.bf16.gmra.mrb[0].mxu0 %v1102
        %v1321 = vpop.f32.mrb[0].mxu0
        %v1322 = vadd.f32 %v1125, %v1321
        %v1323 = vpop.f32.mrb[0].mxu0
        %v1324 = vpop.f32.mrb[0].mxu0
        %v1325 = vadd.f32 %v1125, %v1324
        %v1326 = vpop.f32.mrb[0].mxu0
        %1327 = vmatprep.mubr.bf16.mxu0 0
        %1328 = vmatmul.mubr.bf16.gmra.mrb[0].mxu0 %v1103
        %v1329 = vpop.f32.mrb[0].mxu0
        %v1330 = vadd.f32 %v1125, %v1329
        %v1331 = vpop.f32.mrb[0].mxu0
        %v1332 = vpop.f32.mrb[0].mxu0
        %v1333 = vadd.f32 %v1125, %v1332
        %v1334 = vpop.f32.mrb[0].mxu0
        %1335 = vdwg.mxu0
        %1336 = vst [vmem:[%s220] sm:$0xff] %v1210
        %1337 = vst [vmem:[%s220 + $0x8] sm:$0xff] %v1213
        %1338 = vst [vmem:[%s220 + $0x10] sm:$0xff] %v1218
        %1339 = vst [vmem:[%s220 + $0x18] sm:$0xff] %v1221
        %1340 = vst [vmem:[%s220 + $0x20] sm:$0xff] %v1226
        %1341 = vst [vmem:[%s220 + $0x28] sm:$0xff] %v1229
        %1342 = vst [vmem:[%s220 + $0x30] sm:$0xff] %v1234
        %1343 = vst [vmem:[%s220 + $0x38] sm:$0xff] %v1237
        %1344 = vst [vmem:[%s220 + $0x40] sm:$0xff] %v1242
        %1345 = vst [vmem:[%s220 + $0x48] sm:$0xff] %v1245
        %1346 = vst [vmem:[%s220 + $0x50] sm:$0xff] %v1250
        %1347 = vst [vmem:[%s220 + $0x58] sm:$0xff] %v1253
        %1348 = vst [vmem:[%s220 + $0x60] sm:$0xff] %v1258
        %1349 = vst [vmem:[%s220 + $0x68] sm:$0xff] %v1261
        %1350 = vst [vmem:[%s220 + $0x70] sm:$0xff] %v1266
        %1351 = vst [vmem:[%s220 + $0x78] sm:$0xff] %v1269
        %1352 = vst [vmem:[%s220 + $0x80] sm:$0xff] %v1274
        %1353 = vst [vmem:[%s220 + $0x88] sm:$0xff] %v1277
        %1354 = vst [vmem:[%s220 + $0x90] sm:$0xff] %v1282
        %1355 = vst [vmem:[%s220 + $0x98] sm:$0xff] %v1285
        %1356 = vst [vmem:[%s220 + $0xa0] sm:$0xff] %v1290
        %1357 = vst [vmem:[%s220 + $0xa8] sm:$0xff] %v1293
        %1358 = vst [vmem:[%s220 + $0xb0] sm:$0xff] %v1298
        %1359 = vst [vmem:[%s220 + $0xb8] sm:$0xff] %v1301
        %1360 = vst [vmem:[%s220 + $0xc0] sm:$0xff] %v1306
        %1361 = vst [vmem:[%s220 + $0xc8] sm:$0xff] %v1309
        %1362 = vst [vmem:[%s220 + $0xd0] sm:$0xff] %v1314
        %1363 = vst [vmem:[%s220 + $0xd8] sm:$0xff] %v1317
        %1364 = vst [vmem:[%s220 + $0xe0] sm:$0xff] %v1322
        %1365 = vst [vmem:[%s220 + $0xe8] sm:$0xff] %v1325
        %1366 = vst [vmem:[%s220 + $0xf0] sm:$0xff] %v1330
        %1367 = vst [vmem:[%s220 + $0xf8] sm:$0xff] %v1333
        %s1368 = sand.u32 %s137, 1
        %s1369 = scalar_lea.sflag [#allocation3], %s1368
        %s1370 = sand.u32 %s137, 1
        %s1371 = smul.addr %s1370, 256
        %s1372 = scalar_lea.vmem [#allocation2], %s1371
        // Predicated region
        $region41: #{tpu_custom_call.1} parent=39 // pred_check
          %p1373 = pneg %p147
        $region42: #{tpu_custom_call.1} parent=39 // pred_check_branch
          %1375 = sbr.rel (%p1373) target = $region44
        $region43: #{tpu_custom_call.1} parent=39 // pred_region
          %s1376 = smul.u32 32, %s19
          %s1378 = ssub.s32 4096, 4096
          %1379 = vsyncadd %s1369, %s1378
          %s1380 = smul.addr %s1376, 128
          %s1381 = scalar_lea.hbm %s5, %s1380
          %s1382 = sshll.u32 %s1372, 4
          %s1383 = int_to_ptr.vmem [resolvable:$true] %s1382
          %1388 = dma.vmem_to_hbm [thread:$0]  %s1383, 4096, %s1381, %s1369, 128, 128, 8
        $region44: #{tpu_custom_call.1} parent=39 // pred_fallthru
          _
      $region40: #{tpu_custom_call.1} parent=5 // pred_fallthru
        _
      %p1389 = scmp.le.s32.totalorder 2, %s14
      // Predicated region
      $region45: #{tpu_custom_call.1} parent=5 // pred_check
        %p1390 = pneg %p1389
      $region46: #{tpu_custom_call.1} parent=5 // pred_check_branch
        %1392 = sbr.rel (%p1390) target = $region48
      $region47: #{tpu_custom_call.1} parent=5 // pred_region
        %s1393 = ssub.s32 %s14, 2
        // Predicated region
        $region49: #{tpu_custom_call.1} parent=47 // pred_check
          %p1394 = pneg %p153
        $region50: #{tpu_custom_call.1} parent=47 // pred_check_branch
          %1396 = sbr.rel (%p1394) target = $region52
        $region51: #{tpu_custom_call.1} parent=47 // pred_region
          %s1397 = sand.u32 %s138, 1
          %s1398 = scalar_lea.sflag [#allocation3], %s1397
          %s1399 = sand.u32 %s138, 1
          %s1400 = smul.addr %s1399, 256
          %s1401 = scalar_lea.vmem [#allocation2], %s1400
          %1402 = dma.done %s1398, 4096
        $region52: #{tpu_custom_call.1} parent=47 // pred_fallthru
          _
      $region48: #{tpu_custom_call.1} parent=5 // pred_fallthru
        _
    $region6: #{tpu_custom_call.1} parent=1 // loop_footer
      %s18 = sadd.s32 1, %s14
    $region7: #{tpu_custom_call.1} parent=1 // loop_footer_branch
      %13 = sbr.rel target = $region3
    $region8: #{tpu_custom_call.1} parent=1 // loop_exit
      _
    %1403 = vsyncpa [#allocation3], 1
    %s1404 = scalar_lea.sflag [#allocation3], 1
    %1405 = vsyncpa %s1404, 1

</llo_original>
